<compile_context>
chip_gen: v7x
topology: tpu7x:2x2x1
jax: 0.10.0
libtpu: 0.0.40
codegen_flags: <defaults>
</compile_context>

<pallas_src>
import jax
import jax.numpy as jnp
from jax import lax
from jax.experimental import pallas as pl
from jax.experimental.pallas import tpu as pltpu


def decoder_kernel(p_ref, w1_ref, shift_ref, w2_ref, b2_ref, o_ref):
    # p_ref:     (9*Cin, L)        bf16 im2col patches (L lanes of this block)
    # w1_ref:    (Cmid, 9*Cin)     bf16 BN-scale-folded 3x3 weights
    # shift_ref: (Cmid, 1)         f32  BN shift (beta - mean*scale)
    # w2_ref:    (num_classes, Cmid) bf16 1x1 conv weights
    # b2_ref:    (num_classes, 1)  f32  1x1 conv bias
    # o_ref:     (num_classes, L)  f32  lane-dense output slab
    h = jnp.dot(w1_ref[...], p_ref[...], preferred_element_type=jnp.float32)
    h = jnp.maximum(h + shift_ref[...], 0.0).astype(jnp.bfloat16)
    o = jnp.dot(w2_ref[...], h, preferred_element_type=jnp.float32)
    o_ref[...] = (o + b2_ref[...]).astype(o_ref.dtype)


def decoder_forward(x_nchw, params):
    """x_nchw: (N, Cin, H, W) float32. Returns (N, num_classes, H, W) float32."""
    w1, gamma, beta, mean, var, w2, b2 = (
        params["w1"], params["gamma"], params["beta"],
        params["mean"], params["var"], params["w2"], params["b2"])
    eps = 1e-5

    N, Cin, H, W = x_nchw.shape
    Cmid = w1.shape[3]
    num_classes = w2.shape[1]
    HW = H * W
    K1 = 9 * Cin
    total_lanes = N * HW

    # --- im2col directly in the transposed (K1, N*HW) layout ----------------
    x_pad = jnp.pad(x_nchw, ((0, 0), (0, 0), (1, 1), (1, 1)))
    taps = [x_pad[:, :, dy:dy + H, dx:dx + W]
            for dy in range(3) for dx in range(3)]          # 9 x (N,Cin,H,W)
    # rows: (tap, cin) to match w1 flatten; lanes: (n, h, w)
    patches = (jnp.stack(taps, axis=0)                       # (9,N,Cin,H,W)
               .transpose(0, 2, 1, 3, 4)                     # (9,Cin,N,H,W)
               .reshape(K1, total_lanes)
               .astype(jnp.bfloat16))

    # --- fold BN scale into the conv weights; shift/bias as small refs -------
    scale = gamma / jnp.sqrt(var + eps)                      # (Cmid,)
    shift_col = (beta - mean * scale).reshape(Cmid, 1).astype(jnp.float32)
    # HWIO -> (Cmid, 9*Cin), tap order (ky,kx,cin) matches im2col stacking.
    w1_mat = jnp.transpose(w1, (3, 0, 1, 2)).reshape(Cmid, K1)
    w1_bf = (w1_mat * scale[:, None]).astype(jnp.bfloat16)   # (Cmid, K1)
    w2_bf = w2.T.astype(jnp.bfloat16)                        # (num_classes, Cmid)
    b2_col = b2.reshape(num_classes, 1).astype(jnp.float32)

    # --- grid: split lanes into two 128-multiple blocks when possible --------
    # (feeds both v7x TCs; same 2 serial steps as before on v5e/v6e; a single
    #  step when the slab is small)
    if total_lanes >= 512 and total_lanes % 256 == 0:
        lane_tile = total_lanes // 2
    else:
        lane_tile = total_lanes
    grid = (total_lanes // lane_tile,)

    out_flat = pl.pallas_call(
        decoder_kernel,
        out_shape=jax.ShapeDtypeStruct((num_classes, total_lanes), jnp.float32),
        grid_spec=pltpu.PrefetchScalarGridSpec(
            num_scalar_prefetch=0,
            grid=grid,
            in_specs=[
                pl.BlockSpec((K1, lane_tile), lambda i: (0, i)),
                pl.BlockSpec((Cmid, K1), lambda i: (0, 0)),
                pl.BlockSpec((Cmid, 1), lambda i: (0, 0)),
                pl.BlockSpec((num_classes, Cmid), lambda i: (0, 0)),
                pl.BlockSpec((num_classes, 1), lambda i: (0, 0)),
            ],
            out_specs=pl.BlockSpec((num_classes, lane_tile), lambda i: (0, i)),
        ),
        compiler_params=pltpu.CompilerParams(
            dimension_semantics=("parallel",)),
    )(patches, w1_bf, shift_col, w2_bf, b2_col)

    # (num_classes, N*H*W) -> (N, num_classes, H, W): tiny reshape + transpose.
    return jnp.transpose(out_flat.reshape(num_classes, N, H, W), (1, 0, 2, 3))


def reference_forward(x_nchw, params):
    """Pure-JAX f32 reference (NCHW, eval-mode BN) for validation."""
    w1, gamma, beta, mean, var, w2, b2 = (
        params["w1"], params["gamma"], params["beta"],
        params["mean"], params["var"], params["w2"], params["b2"])
    eps = 1e-5
    w1_oihw = jnp.transpose(w1, (3, 2, 0, 1))
    w2_oihw = jnp.transpose(w2, (1, 0)).reshape(w2.shape[1], w2.shape[0], 1, 1)
    y = lax.conv_general_dilated(x_nchw, w1_oihw, (1, 1), ((1, 1), (1, 1)),
                                 dimension_numbers=("NCHW", "OIHW", "NCHW"))
    s = gamma / jnp.sqrt(var + eps)
    y = y * s[None, :, None, None] + (beta - mean * s)[None, :, None, None]
    y = jnp.maximum(y, 0.0)
    y = lax.conv_general_dilated(y, w2_oihw, (1, 1), ((0, 0), (0, 0)),
                                 dimension_numbers=("NCHW", "OIHW", "NCHW"))
    return y + b2[None, :, None, None]


if __name__ == "__main__":
    # Small shapes consistent with the module's forward.
    N, Cin, H, W = 2, 4, 16, 16
    Cmid = 256            # fixed by the module (Conv2d -> 256)
    num_classes = 8

    key = jax.random.PRNGKey(0)
    k_x, k_w1, k_g, k_b, k_m, k_v, k_w2, k_b2 = jax.random.split(key, 8)

    x = jax.random.normal(k_x, (N, Cin, H, W), jnp.float32)

    params = {
        "w1":    jax.random.normal(k_w1, (3, 3, Cin, Cmid), jnp.float32) * 0.1,
        "gamma": jax.random.normal(k_g, (Cmid,), jnp.float32) * 0.1 + 1.0,
        "beta":  jax.random.normal(k_b, (Cmid,), jnp.float32) * 0.1,
        "mean":  jax.random.normal(k_m, (Cmid,), jnp.float32) * 0.1,
        "var":   jax.random.uniform(k_v, (Cmid,), jnp.float32, 0.5, 1.5),
        "w2":    jax.random.normal(k_w2, (Cmid, num_classes), jnp.float32) * 0.1,
        "b2":    jax.random.normal(k_b2, (num_classes,), jnp.float32) * 0.1,
    }

    out = jax.jit(decoder_forward)(x, params)
    out = jax.block_until_ready(out)

    ref = reference_forward(x, params)
    assert out.shape == (N, num_classes, H, W)
    # bf16 MXU operands with f32 accumulation -> bf16-appropriate tolerance.
    assert jnp.allclose(out, ref, atol=2e-2, rtol=2e-2), "mismatch vs reference"

    print("KERNEL_OK")
</pallas_src>

<mosaic_0001>
module attributes {stable_mosaic.version = 11 : i64} {
  func.func @decoder_kernel(%arg0: i32, %arg1: memref<36x256xbf16, #tpu.memory_space<vmem>>, %arg2: memref<256x36xbf16, #tpu.memory_space<vmem>>, %arg3: memref<256x1xf32, #tpu.memory_space<vmem>>, %arg4: memref<8x256xbf16, #tpu.memory_space<vmem>>, %arg5: memref<8x1xf32, #tpu.memory_space<vmem>>, %arg6: memref<8x256xf32, #tpu.memory_space<vmem>>) attributes {dimension_semantics = [#tpu.dimension_semantics<parallel>], iteration_bounds = array<i64: 2>, scalar_prefetch = 0 : i64, scratch_operands = 0 : i64, tpu.core_type = #tpu.core_type<tc>, window_params = [{transform_indices = @transform_0, window_bounds = array<i64: 36, 256>}, {pipeline_mode = #tpu.pipeline_mode<synchronous>, transform_indices = @transform_1, window_bounds = array<i64: 256, 36>}, {pipeline_mode = #tpu.pipeline_mode<synchronous>, transform_indices = @transform_2, window_bounds = array<i64: 256, 1>}, {pipeline_mode = #tpu.pipeline_mode<synchronous>, transform_indices = @transform_3, window_bounds = array<i64: 8, 256>}, {pipeline_mode = #tpu.pipeline_mode<synchronous>, transform_indices = @transform_4, window_bounds = array<i64: 8, 1>}, {transform_indices = @transform_5, window_bounds = array<i64: 8, 256>}]} {
    %c0 = arith.constant 0 : index
    %c0_0 = arith.constant 0 : index
    %0 = vector.load %arg2[%c0, %c0_0] : memref<256x36xbf16, #tpu.memory_space<vmem>>, vector<256x36xbf16>
    %c0_1 = arith.constant 0 : index
    %c0_2 = arith.constant 0 : index
    %1 = vector.load %arg1[%c0_1, %c0_2] : memref<36x256xbf16, #tpu.memory_space<vmem>>, vector<36x256xbf16>
    %cst = arith.constant dense<0.000000e+00> : vector<256x256xf32>
    %2 = tpu.matmul %0, %1, %cst {dimension_numbers = #tpu.dot_dimension_numbers<[1], [0], [0], [1], [0, 0, 1, 1], [], []>} : vector<256x36xbf16>, vector<36x256xbf16>, vector<256x256xf32> -> vector<256x256xf32>
    %c0_3 = arith.constant 0 : index
    %c0_4 = arith.constant 0 : index
    %3 = vector.load %arg3[%c0_3, %c0_4] : memref<256x1xf32, #tpu.memory_space<vmem>>, vector<256x1xf32>
    %4 = vector.broadcast %3 : vector<256x1xf32> to vector<256x256xf32>
    %5 = arith.addf %2, %4 : vector<256x256xf32>
    %cst_5 = arith.constant 0.000000e+00 : f32
    %6 = vector.broadcast %cst_5 : f32 to vector<256x256xf32>
    %7 = arith.maximumf %5, %6 : vector<256x256xf32>
    %8 = arith.truncf %7 : vector<256x256xf32> to vector<256x256xbf16>
    %c0_6 = arith.constant 0 : index
    %c0_7 = arith.constant 0 : index
    %9 = vector.load %arg4[%c0_6, %c0_7] : memref<8x256xbf16, #tpu.memory_space<vmem>>, vector<8x256xbf16>
    %cst_8 = arith.constant dense<0.000000e+00> : vector<8x256xf32>
    %10 = tpu.matmul %9, %8, %cst_8 {dimension_numbers = #tpu.dot_dimension_numbers<[1], [0], [0], [1], [0, 0, 1, 1], [], []>} : vector<8x256xbf16>, vector<256x256xbf16>, vector<8x256xf32> -> vector<8x256xf32>
    %c0_9 = arith.constant 0 : index
    %c0_10 = arith.constant 0 : index
    %11 = vector.load %arg5[%c0_9, %c0_10] : memref<8x1xf32, #tpu.memory_space<vmem>>, vector<8x1xf32>
    %12 = vector.broadcast %11 : vector<8x1xf32> to vector<8x256xf32>
    %13 = arith.addf %10, %12 : vector<8x256xf32>
    %c0_11 = arith.constant 0 : index
    %c0_12 = arith.constant 0 : index
    %14 = vector.load %arg6[%c0_11, %c0_12] : memref<8x256xf32, #tpu.memory_space<vmem>>, vector<8x256xf32>
    tpu.vector_store %arg6[%c0_11, %c0_12], %13 {strides = array<i32>} : memref<8x256xf32, #tpu.memory_space<vmem>>, vector<8x256xf32>,
    return
  }
  func.func @transform_0(%arg0: i32) -> (i32, i32) {
    %c0_i32 = arith.constant 0 : i32
    %c0_i32_0 = arith.constant 0 : i32
    return %c0_i32, %arg0 : i32, i32
  }
  func.func @transform_1(%arg0: i32) -> (i32, i32) {
    %c0_i32 = arith.constant 0 : i32
    %c0_i32_0 = arith.constant 0 : i32
    %c0_i32_1 = arith.constant 0 : i32
    return %c0_i32, %c0_i32_0 : i32, i32
  }
  func.func @transform_2(%arg0: i32) -> (i32, i32) {
    %c0_i32 = arith.constant 0 : i32
    %c0_i32_0 = arith.constant 0 : i32
    %c0_i32_1 = arith.constant 0 : i32
    return %c0_i32, %c0_i32_0 : i32, i32
  }
  func.func @transform_3(%arg0: i32) -> (i32, i32) {
    %c0_i32 = arith.constant 0 : i32
    %c0_i32_0 = arith.constant 0 : i32
    %c0_i32_1 = arith.constant 0 : i32
    return %c0_i32, %c0_i32_0 : i32, i32
  }
  func.func @transform_4(%arg0: i32) -> (i32, i32) {
    %c0_i32 = arith.constant 0 : i32
    %c0_i32_0 = arith.constant 0 : i32
    %c0_i32_1 = arith.constant 0 : i32
    return %c0_i32, %c0_i32_0 : i32, i32
  }
  func.func @transform_5(%arg0: i32) -> (i32, i32) {
    %c0_i32 = arith.constant 0 : i32
    %c0_i32_0 = arith.constant 0 : i32
    return %c0_i32, %arg0 : i32, i32
  }
}

</mosaic_0001>

<llo_original>
// kernel: decoder_forward.1
$region0: #{decoder_forward.1}
  #allocation0 [shape = 'u32[]', space=smem, size = 0x4, offset = 0x4, fixed_abs, tag = 'smem constant byte address 0x4 - core index']
  #allocation1 [shape = 'u32[144,128]{1,0:T(1,128)}', space=vmem, size = 0x12000, scoped, tag = 'internal scratch']
  %s0 = inlined_call_operand.vmem [shape: bf16[36,512], index: 0, kind: input, shape index: {}]
  %s1 = inlined_call_operand.vmem [shape: bf16[256,36], index: 1, kind: input, shape index: {}]
  %s2 = inlined_call_operand.vmem [shape: f32[256,1], index: 2, kind: input, shape index: {}]
  %s3 = inlined_call_operand.vmem [shape: bf16[8,256], index: 3, kind: input, shape index: {}]
  %s4 = inlined_call_operand.vmem [shape: f32[8,1], index: 4, kind: input, shape index: {}]
  %s5 = inlined_call_operand.vmem [shape: f32[8,512], index: 5, kind: output, shape index: {}]
  %s6 = sld [smem:[#allocation0]]
  $region91: #{decoder_forward.1} parent=0
    _
  %s8 = ssub.s32 1, %s6
  %s9 = scalar_select 0, %s8, %s6
  $region1: #{decoder_forward.1} parent=0
    #allocation2 [shape = 'u8[40960]{0}', space=vmem, size = 0xa000, scoped, tag = 'input window, operand 0']
    loop: start=0, step=1, limit=4
    $region2: #{decoder_forward.1} parent=1 // loop_pre_header
      _
    $region3: #{decoder_forward.1} parent=1 // loop_header
      %s11 = sphi 0, %s15
      %p12 = scmp.ge.s32.totalorder %s11, 4
      %s21 = sphi 0, %s23
      %s24 = sphi 0, %s21
      %s25 = sphi 0, %s24
      %s41 = sphi 0, %s25
      %s45 = sphi 0, %s45
      %s47 = sphi 0, %s45
      %s48 = sphi 0, %s47
      %s62 = sphi 0, %s48
      %s66 = sphi 0, %s66
      %s68 = sphi 0, %s66
      %s69 = sphi 0, %s68
      %s83 = sphi 0, %s69
      %s87 = sphi 0, %s87
      %s89 = sphi 0, %s87
      %s90 = sphi 0, %s89
      %s104 = sphi 0, %s90
      %s108 = sphi 0, %s108
      %s110 = sphi 0, %s108
      %s111 = sphi 0, %s110
      %s125 = sphi 0, %s111
      %s131 = sphi 0, %s133
      %s134 = sphi 0, %s131
      %s135 = sphi 0, %s134
      %s151 = sphi 0, %s135
    $region4: #{decoder_forward.1} parent=1 // loop_header_branch
      %14 = sbr.rel (%p12) target = $region8
    $region5: #{decoder_forward.1} parent=1 // loop_body
      %s16 = ssub.s32 %s11, 1
      %s17 = ssub.s32 %s11, 2
      %s18 = sadd.s32 %s11, 1
      %s19 = ssub.s32 %s11, %s18
      %p20 = scmp.eq.s32.totalorder %s19, 0
      %s22 = sadd.s32 %s21, 1
      %s23 = scalar_select %p20, %s21, %s22
      %p26 = pneg %p20
      %p27 = scmp.eq.s32.totalorder %s11, 1
      %p28 = por %p26, %p27
      %p29 = scmp.ne.s32.totalorder %s21, %s24
      %p30 = scmp.eq.s32.totalorder %s11, 0
      %p31 = por %p29, %p30
      %p32 = scmp.ne.s32.totalorder %s21, %s24
      %p33 = scmp.eq.s32.totalorder %s16, 1
      %p34 = por %p32, %p33
      %p35 = scmp.ne.s32.totalorder %s24, %s25
      %p36 = scmp.eq.s32.totalorder %s16, 0
      %p37 = por %p35, %p36
      %p38 = scmp.ne.s32.totalorder %s24, %s25
      %p39 = scmp.eq.s32.totalorder %s17, 1
      %p40 = por %p38, %p39
      %p42 = scmp.ne.s32.totalorder %s25, %s41
      %p43 = scmp.eq.s32.totalorder %s17, 0
      %p44 = por %p42, %p43
      %s46 = sadd.s32 %s45, 1
      %p49 = scmp.eq.s32.totalorder %s11, 1
      %p50 = scmp.ne.s32.totalorder %s45, %s47
      %p51 = scmp.eq.s32.totalorder %s11, 0
      %p52 = por %p50, %p51
      %p53 = scmp.ne.s32.totalorder %s45, %s47
      %p54 = scmp.eq.s32.totalorder %s16, 1
      %p55 = por %p53, %p54
      %p56 = scmp.ne.s32.totalorder %s47, %s48
      %p57 = scmp.eq.s32.totalorder %s16, 0
      %p58 = por %p56, %p57
      %p59 = scmp.ne.s32.totalorder %s47, %s48
      %p60 = scmp.eq.s32.totalorder %s17, 1
      %p61 = por %p59, %p60
      %p63 = scmp.ne.s32.totalorder %s48, %s62
      %p64 = scmp.eq.s32.totalorder %s17, 0
      %p65 = por %p63, %p64
      %s67 = sadd.s32 %s66, 1
      %p70 = scmp.eq.s32.totalorder %s11, 1
      %p71 = scmp.ne.s32.totalorder %s66, %s68
      %p72 = scmp.eq.s32.totalorder %s11, 0
      %p73 = por %p71, %p72
      %p74 = scmp.ne.s32.totalorder %s66, %s68
      %p75 = scmp.eq.s32.totalorder %s16, 1
      %p76 = por %p74, %p75
      %p77 = scmp.ne.s32.totalorder %s68, %s69
      %p78 = scmp.eq.s32.totalorder %s16, 0
      %p79 = por %p77, %p78
      %p80 = scmp.ne.s32.totalorder %s68, %s69
      %p81 = scmp.eq.s32.totalorder %s17, 1
      %p82 = por %p80, %p81
      %p84 = scmp.ne.s32.totalorder %s69, %s83
      %p85 = scmp.eq.s32.totalorder %s17, 0
      %p86 = por %p84, %p85
      %s88 = sadd.s32 %s87, 1
      %p91 = scmp.eq.s32.totalorder %s11, 1
      %p92 = scmp.ne.s32.totalorder %s87, %s89
      %p93 = scmp.eq.s32.totalorder %s11, 0
      %p94 = por %p92, %p93
      %p95 = scmp.ne.s32.totalorder %s87, %s89
      %p96 = scmp.eq.s32.totalorder %s16, 1
      %p97 = por %p95, %p96
      %p98 = scmp.ne.s32.totalorder %s89, %s90
      %p99 = scmp.eq.s32.totalorder %s16, 0
      %p100 = por %p98, %p99
      %p101 = scmp.ne.s32.totalorder %s89, %s90
      %p102 = scmp.eq.s32.totalorder %s17, 1
      %p103 = por %p101, %p102
      %p105 = scmp.ne.s32.totalorder %s90, %s104
      %p106 = scmp.eq.s32.totalorder %s17, 0
      %p107 = por %p105, %p106
      %s109 = sadd.s32 %s108, 1
      %p112 = scmp.eq.s32.totalorder %s11, 1
      %p113 = scmp.ne.s32.totalorder %s108, %s110
      %p114 = scmp.eq.s32.totalorder %s11, 0
      %p115 = por %p113, %p114
      %p116 = scmp.ne.s32.totalorder %s108, %s110
      %p117 = scmp.eq.s32.totalorder %s16, 1
      %p118 = por %p116, %p117
      %p119 = scmp.ne.s32.totalorder %s110, %s111
      %p120 = scmp.eq.s32.totalorder %s16, 0
      %p121 = por %p119, %p120
      %p122 = scmp.ne.s32.totalorder %s110, %s111
      %p123 = scmp.eq.s32.totalorder %s17, 1
      %p124 = por %p122, %p123
      %p126 = scmp.ne.s32.totalorder %s111, %s125
      %p127 = scmp.eq.s32.totalorder %s17, 0
      %p128 = por %p126, %p127
      %s129 = ssub.s32 %s11, %s18
      %p130 = scmp.eq.s32.totalorder %s129, 0
      %s132 = sadd.s32 %s131, 1
      %s133 = scalar_select %p130, %s131, %s132
      %p136 = pneg %p130
      %p137 = scmp.eq.s32.totalorder %s11, 1
      %p138 = por %p136, %p137
      %p139 = scmp.ne.s32.totalorder %s131, %s134
      %p140 = scmp.eq.s32.totalorder %s11, 0
      %p141 = por %p139, %p140
      %p142 = scmp.ne.s32.totalorder %s131, %s134
      %p143 = scmp.eq.s32.totalorder %s16, 1
      %p144 = por %p142, %p143
      %p145 = scmp.ne.s32.totalorder %s134, %s135
      %p146 = scmp.eq.s32.totalorder %s16, 0
      %p147 = por %p145, %p146
      %p148 = scmp.ne.s32.totalorder %s134, %s135
      %p149 = scmp.eq.s32.totalorder %s17, 1
      %p150 = por %p148, %p149
      %p152 = scmp.ne.s32.totalorder %s135, %s151
      %p153 = scmp.eq.s32.totalorder %s17, 0
      %p154 = por %p152, %p153
      %p155 = scmp.le.s32.totalorder 1, %s11
      %p156 = scmp.lt.s32.totalorder %s11, 3
      %p157 = pnand %p155, %p156
      %p158 = pneg %p157
      // Predicated region
      $region9: #{decoder_forward.1} parent=5 // pred_check
        _
      $region10: #{decoder_forward.1} parent=5 // pred_check_branch
        %160 = sbr.rel (%p157) target = $region12
      $region11: #{decoder_forward.1} parent=5 // pred_region
        %s161 = ssub.s32 %s11, 1
        // Predicated region
        $region13: #{decoder_forward.1} parent=11 // pred_check
          %p162 = pneg %p58
        $region14: #{decoder_forward.1} parent=11 // pred_check_branch
          %164 = sbr.rel (%p162) target = $region16
        $region15: #{decoder_forward.1} parent=11 // pred_region
          _
        $region16: #{decoder_forward.1} parent=11 // pred_fallthru
          _
        // Predicated region
        $region17: #{decoder_forward.1} parent=11 // pred_check
          %p165 = pneg %p79
        $region18: #{decoder_forward.1} parent=11 // pred_check_branch
          %167 = sbr.rel (%p165) target = $region20
        $region19: #{decoder_forward.1} parent=11 // pred_region
          _
        $region20: #{decoder_forward.1} parent=11 // pred_fallthru
          _
        // Predicated region
        $region21: #{decoder_forward.1} parent=11 // pred_check
          %p168 = pneg %p100
        $region22: #{decoder_forward.1} parent=11 // pred_check_branch
          %170 = sbr.rel (%p168) target = $region24
        $region23: #{decoder_forward.1} parent=11 // pred_region
          _
        $region24: #{decoder_forward.1} parent=11 // pred_fallthru
          _
        // Predicated region
        $region25: #{decoder_forward.1} parent=11 // pred_check
          %p171 = pneg %p121
        $region26: #{decoder_forward.1} parent=11 // pred_check_branch
          %173 = sbr.rel (%p171) target = $region28
        $region27: #{decoder_forward.1} parent=11 // pred_region
          _
        $region28: #{decoder_forward.1} parent=11 // pred_fallthru
          _
      $region12: #{decoder_forward.1} parent=5 // pred_fallthru
        _
      %p174 = scmp.lt.s32.totalorder %s11, 2
      // Predicated region
      $region29: #{decoder_forward.1} parent=5 // pred_check
        %p175 = pneg %p174
      $region30: #{decoder_forward.1} parent=5 // pred_check_branch
        %177 = sbr.rel (%p175) target = $region32
      $region31: #{decoder_forward.1} parent=5 // pred_region
        // Predicated region
        $region33: #{decoder_forward.1} parent=31 // pred_check
          %p178 = pneg %p31
        $region34: #{decoder_forward.1} parent=31 // pred_check_branch
          %180 = sbr.rel (%p178) target = $region36
        $region35: #{decoder_forward.1} parent=31 // pred_region
          %s181 = sand.u32 %s21, 1
          %s182 = sand.u32 %s21, 1
          %s183 = smul.addr %s182, 40
          %s184 = scalar_lea.vmem [#allocation2], %s183
          %s185 = smul.u32 2, %s11
          %s186 = smul.addr %s185, 4
          %s187 = scalar_lea.vmem %s0, %s186
          // Predicated region
          $region37: #{decoder_forward.1} parent=35 // pred_check
            _
          $region38: #{decoder_forward.1} parent=35 // pred_check_branch
            %189 = sbr.rel (0) target = $region40
          $region39: #{decoder_forward.1} parent=35 // pred_region
            // Predicated region
            $region41: #{decoder_forward.1} parent=39 // pred_check
              _
            $region42: #{decoder_forward.1} parent=39 // pred_check_branch
              %191 = sbr.rel (0) target = $region44
            $region43: #{decoder_forward.1} parent=39 // pred_region
              // Predicated region
              $region56: #{decoder_forward.1} parent=43 // pred_check
                _
              $region57: #{decoder_forward.1} parent=43 // pred_check_branch
                %214 = sbr.rel (0) target = $region59
              $region58: #{decoder_forward.1} parent=43 // pred_region
                loop: start=0, step=1, limit=1
                $region60: #{decoder_forward.1} parent=58 // loop_pre_header
                  _
                $region61: #{decoder_forward.1} parent=58 // loop_header
                  %s216 = sphi 0, %s220
                  %p217 = scmp.ge.s32.totalorder %s216, 1
                  %s221 = sphi %s187, %s187
                  %s222 = sphi %s184, %s184
                $region62: #{decoder_forward.1} parent=58 // loop_header_branch
                  %219 = sbr.rel (%p217) target = $region66
                $region63: #{decoder_forward.1} parent=58 // loop_body
                  %v223 = vld [vmem:[%s221] sm:$0xff]
                  %224 = vst [vmem:[%s222] sm:$0xff] %v223
                  %v225 = vld [vmem:[%s221 + $0x10] sm:$0xff]
                  %226 = vst [vmem:[%s222 + $0x8] sm:$0xff] %v225
                  %v227 = vld [vmem:[%s221 + $0x20] sm:$0xff]
                  %228 = vst [vmem:[%s222 + $0x10] sm:$0xff] %v227
                  %v229 = vld [vmem:[%s221 + $0x30] sm:$0xff]
                  %230 = vst [vmem:[%s222 + $0x18] sm:$0xff] %v229
                  %v231 = vld [vmem:[%s221 + $0x40] sm:$0xff]
                  %232 = vst [vmem:[%s222 + $0x20] sm:$0xff] %v231
                $region64: #{decoder_forward.1} parent=58 // loop_footer
                  %s220 = sadd.s32 1, %s216
                $region65: #{decoder_forward.1} parent=58 // loop_footer_branch
                  %215 = sbr.rel target = $region61
                $region66: #{decoder_forward.1} parent=58 // loop_exit
                  _
              $region59: #{decoder_forward.1} parent=43 // pred_fallthru
                _
              // Predicated region
              $region67: #{decoder_forward.1} parent=43 // pred_check
                _
              $region68: #{decoder_forward.1} parent=43 // pred_check_branch
                %234 = sbr.rel target = $region70
              $region69: #{decoder_forward.1} parent=43 // pred_region
                _
              $region70: #{decoder_forward.1} parent=43 // pred_fallthru
                _
            $region44: #{decoder_forward.1} parent=39 // pred_fallthru
              _
            // Predicated region
            $region45: #{decoder_forward.1} parent=39 // pred_check
              _
            $region46: #{decoder_forward.1} parent=39 // pred_check_branch
              %193 = sbr.rel target = $region48
            $region47: #{decoder_forward.1} parent=39 // pred_region
              loop: start=0, step=1, limit=1
              $region49: #{decoder_forward.1} parent=47 // loop_pre_header
                _
              $region50: #{decoder_forward.1} parent=47 // loop_header
                %s196 = sphi 0, %s200
                %p197 = scmp.ge.s32.totalorder %s196, 1
                %s201 = sphi %s187, %s187
                %s202 = sphi %s184, %s184
              $region51: #{decoder_forward.1} parent=47 // loop_header_branch
                %199 = sbr.rel (%p197) target = $region55
              $region52: #{decoder_forward.1} parent=47 // loop_body
                %v203 = vld [vmem:[%s201] sm:$0xff]
                %204 = vst [vmem:[%s202] sm:$0xff] %v203
                %v205 = vld [vmem:[%s201 + $0x10] sm:$0xff]
                %206 = vst [vmem:[%s202 + $0x8] sm:$0xff] %v205
                %v207 = vld [vmem:[%s201 + $0x20] sm:$0xff]
                %208 = vst [vmem:[%s202 + $0x10] sm:$0xff] %v207
                %v209 = vld [vmem:[%s201 + $0x30] sm:$0xff]
                %210 = vst [vmem:[%s202 + $0x18] sm:$0xff] %v209
                %v211 = vld [vmem:[%s201 + $0x40] sm:$0xff]
                %212 = vst [vmem:[%s202 + $0x20] sm:$0xff] %v211
              $region53: #{decoder_forward.1} parent=47 // loop_footer
                %s200 = sadd.s32 1, %s196
              $region54: #{decoder_forward.1} parent=47 // loop_footer_branch
                %195 = sbr.rel target = $region50
              $region55: #{decoder_forward.1} parent=47 // loop_exit
                _
            $region48: #{decoder_forward.1} parent=39 // pred_fallthru
              _
          $region40: #{decoder_forward.1} parent=35 // pred_fallthru
            _
          %235 = vnop
        $region36: #{decoder_forward.1} parent=31 // pred_fallthru
          _
      $region32: #{decoder_forward.1} parent=5 // pred_fallthru
        _
      %p236 = scmp.le.s32.totalorder 1, %s11
      %p237 = scmp.lt.s32.totalorder %s11, 3
      %p238 = pnand %p236, %p237
      %p239 = pneg %p238
      // Predicated region
      $region71: #{decoder_forward.1} parent=5 // pred_check
        _
      $region72: #{decoder_forward.1} parent=5 // pred_check_branch
        %241 = sbr.rel (%p238) target = $region74
      $region73: #{decoder_forward.1} parent=5 // pred_region
        %s242 = ssub.s32 %s11, 1
        %s243 = sand.u32 %s24, 1
        %s244 = sand.u32 %s24, 1
        %s245 = smul.addr %s244, 40
        %s246 = scalar_lea.vmem [#allocation2], %s245
        // Predicated region
        $region75: #{decoder_forward.1} parent=73 // pred_check
          %p247 = pneg %p37
        $region76: #{decoder_forward.1} parent=73 // pred_check_branch
          %249 = sbr.rel (%p247) target = $region78
        $region77: #{decoder_forward.1} parent=73 // pred_region
          _
        $region78: #{decoder_forward.1} parent=73 // pred_fallthru
          _
        %s250 = sand.u32 %s24, 1
        %s251 = sand.u32 %s24, 1
        %s252 = smul.addr %s251, 40
        %s253 = scalar_lea.vmem [#allocation2], %s252
        %p254 = pneg %p37
        %p255 = pneg %p34
        %p256 = pneg %p58
        %p257 = pneg %p55
        %p258 = pneg %p79
        %p259 = pneg %p76
        %p260 = pneg %p100
        %p261 = pneg %p97
        %p262 = pneg %p121
        %p263 = pneg %p118
        %p264 = pneg %p147
        %p265 = pneg %p144
        %s266 = smul.u32 2, %s16
        %p267 = scmp.lt.s32.totalorder %s266, 3
        %s268 = scalar_select %p267, %s266, 3
        %s269 = smul.addr %s268, 8
        %s270 = scalar_lea.vmem %s5, %s269
        %s271 = smul.u32 2, %s16
        %s272 = smul.u32 2, %s16
        %p273 = scmp.lt.s32.totalorder %s272, 3
        %s274 = scalar_select %p273, %s272, 3
        %s275 = smul.addr %s274, 8
        %s276 = scalar_lea.vmem %s5, %s275
        %s277 = smul.u32 2, %s16
        %v279 = vld [vmem:[%s1] sm:$0xf]
        %v280 = vld [vmem:[%s1 + $0x4] sm:$0xf]
        %v281 = vld [vmem:[%s1 + $0x8] sm:$0xf]
        %v282 = vld [vmem:[%s1 + $0xc] sm:$0xf]
        %v283 = vld [vmem:[%s1 + $0x10] sm:$0xf]
        %v284 = vld [vmem:[%s1 + $0x14] sm:$0xf]
        %v285 = vld [vmem:[%s1 + $0x18] sm:$0xf]
        %v286 = vld [vmem:[%s1 + $0x1c] sm:$0xf]
        %v287 = vld [vmem:[%s1 + $0x20] sm:$0xf]
        %v288 = vld [vmem:[%s1 + $0x24] sm:$0xf]
        %v289 = vld [vmem:[%s1 + $0x28] sm:$0xf]
        %v290 = vld [vmem:[%s1 + $0x2c] sm:$0xf]
        %v291 = vld [vmem:[%s1 + $0x30] sm:$0xf]
        %v292 = vld [vmem:[%s1 + $0x34] sm:$0xf]
        %v293 = vld [vmem:[%s1 + $0x38] sm:$0xf]
        %v294 = vld [vmem:[%s1 + $0x3c] sm:$0xf]
        %v295 = vld [vmem:[%s1 + $0x40] sm:$0xf]
        %v296 = vld [vmem:[%s1 + $0x44] sm:$0xf]
        %v297 = vld [vmem:[%s1 + $0x48] sm:$0xf]
        %v298 = vld [vmem:[%s1 + $0x4c] sm:$0xf]
        %v299 = vld [vmem:[%s1 + $0x50] sm:$0xf]
        %v300 = vld [vmem:[%s1 + $0x54] sm:$0xf]
        %v301 = vld [vmem:[%s1 + $0x58] sm:$0xf]
        %v302 = vld [vmem:[%s1 + $0x5c] sm:$0xf]
        %v303 = vld [vmem:[%s1 + $0x60] sm:$0xf]
        %v304 = vld [vmem:[%s1 + $0x64] sm:$0xf]
        %v305 = vld [vmem:[%s1 + $0x68] sm:$0xf]
        %v306 = vld [vmem:[%s1 + $0x6c] sm:$0xf]
        %v307 = vld [vmem:[%s1 + $0x70] sm:$0xf]
        %v308 = vld [vmem:[%s1 + $0x74] sm:$0xf]
        %v309 = vld [vmem:[%s1 + $0x78] sm:$0xf]
        %v310 = vld [vmem:[%s1 + $0x7c] sm:$0xf]
        %v311 = vld [vmem:[%s246] sm:$0xff]
        %v312 = vld [vmem:[%s246 + $0x8] sm:$0xff]
        %v313 = vld [vmem:[%s246 + $0x10] sm:$0xff]
        %v314 = vld [vmem:[%s246 + $0x18] sm:$0xff]
        %v315 = vld [vmem:[%s246 + $0x20] sm:$0x33]
        %v316 = vld [vmem:[%s2] sm:$0xff]
        %v317 = vld [vmem:[%s2 + $0x8] sm:$0xff]
        %v318 = vld [vmem:[%s2 + $0x10] sm:$0xff]
        %v319 = vld [vmem:[%s2 + $0x18] sm:$0xff]
        %v320 = vld [vmem:[%s2 + $0x20] sm:$0xff]
        %v321 = vld [vmem:[%s2 + $0x28] sm:$0xff]
        %v322 = vld [vmem:[%s2 + $0x30] sm:$0xff]
        %v323 = vld [vmem:[%s2 + $0x38] sm:$0xff]
        %v324 = vld [vmem:[%s2 + $0x40] sm:$0xff]
        %v325 = vld [vmem:[%s2 + $0x48] sm:$0xff]
        %v326 = vld [vmem:[%s2 + $0x50] sm:$0xff]
        %v327 = vld [vmem:[%s2 + $0x58] sm:$0xff]
        %v328 = vld [vmem:[%s2 + $0x60] sm:$0xff]
        %v329 = vld [vmem:[%s2 + $0x68] sm:$0xff]
        %v330 = vld [vmem:[%s2 + $0x70] sm:$0xff]
        %v331 = vld [vmem:[%s2 + $0x78] sm:$0xff]
        %v332 = vld [vmem:[%s2 + $0x80] sm:$0xff]
        %v333 = vld [vmem:[%s2 + $0x88] sm:$0xff]
        %v334 = vld [vmem:[%s2 + $0x90] sm:$0xff]
        %v335 = vld [vmem:[%s2 + $0x98] sm:$0xff]
        %v336 = vld [vmem:[%s2 + $0xa0] sm:$0xff]
        %v337 = vld [vmem:[%s2 + $0xa8] sm:$0xff]
        %v338 = vld [vmem:[%s2 + $0xb0] sm:$0xff]
        %v339 = vld [vmem:[%s2 + $0xb8] sm:$0xff]
        %v340 = vld [vmem:[%s2 + $0xc0] sm:$0xff]
        %v341 = vld [vmem:[%s2 + $0xc8] sm:$0xff]
        %v342 = vld [vmem:[%s2 + $0xd0] sm:$0xff]
        %v343 = vld [vmem:[%s2 + $0xd8] sm:$0xff]
        %v344 = vld [vmem:[%s2 + $0xe0] sm:$0xff]
        %v345 = vld [vmem:[%s2 + $0xe8] sm:$0xff]
        %v346 = vld [vmem:[%s2 + $0xf0] sm:$0xff]
        %v347 = vld [vmem:[%s2 + $0xf8] sm:$0xff]
        %349 = vset.pattern.permute.xlu0 0
        %350 = vperm.xlu0 %349, %v316
        %v351 = vpop.permute.xlu0 %350
        %354 = vset.pattern.permute.xlu0 0
        %355 = vperm.xlu0 %354, %v317
        %v356 = vpop.permute.xlu0 %355
        %359 = vset.pattern.permute.xlu0 0
        %360 = vperm.xlu0 %359, %v318
        %v361 = vpop.permute.xlu0 %360
        %364 = vset.pattern.permute.xlu0 0
        %365 = vperm.xlu0 %364, %v319
        %v366 = vpop.permute.xlu0 %365
        %369 = vset.pattern.permute.xlu0 0
        %370 = vperm.xlu0 %369, %v320
        %v371 = vpop.permute.xlu0 %370
        %374 = vset.pattern.permute.xlu0 0
        %375 = vperm.xlu0 %374, %v321
        %v376 = vpop.permute.xlu0 %375
        %379 = vset.pattern.permute.xlu0 0
        %380 = vperm.xlu0 %379, %v322
        %v381 = vpop.permute.xlu0 %380
        %384 = vset.pattern.permute.xlu0 0
        %385 = vperm.xlu0 %384, %v323
        %v386 = vpop.permute.xlu0 %385
        %389 = vset.pattern.permute.xlu0 0
        %390 = vperm.xlu0 %389, %v324
        %v391 = vpop.permute.xlu0 %390
        %394 = vset.pattern.permute.xlu0 0
        %395 = vperm.xlu0 %394, %v325
        %v396 = vpop.permute.xlu0 %395
        %399 = vset.pattern.permute.xlu0 0
        %400 = vperm.xlu0 %399, %v326
        %v401 = vpop.permute.xlu0 %400
        %404 = vset.pattern.permute.xlu0 0
        %405 = vperm.xlu0 %404, %v327
        %v406 = vpop.permute.xlu0 %405
        %409 = vset.pattern.permute.xlu0 0
        %410 = vperm.xlu0 %409, %v328
        %v411 = vpop.permute.xlu0 %410
        %414 = vset.pattern.permute.xlu0 0
        %415 = vperm.xlu0 %414, %v329
        %v416 = vpop.permute.xlu0 %415
        %419 = vset.pattern.permute.xlu0 0
        %420 = vperm.xlu0 %419, %v330
        %v421 = vpop.permute.xlu0 %420
        %424 = vset.pattern.permute.xlu0 0
        %425 = vperm.xlu0 %424, %v331
        %v426 = vpop.permute.xlu0 %425
        %429 = vset.pattern.permute.xlu0 0
        %430 = vperm.xlu0 %429, %v332
        %v431 = vpop.permute.xlu0 %430
        %434 = vset.pattern.permute.xlu0 0
        %435 = vperm.xlu0 %434, %v333
        %v436 = vpop.permute.xlu0 %435
        %439 = vset.pattern.permute.xlu0 0
        %440 = vperm.xlu0 %439, %v334
        %v441 = vpop.permute.xlu0 %440
        %444 = vset.pattern.permute.xlu0 0
        %445 = vperm.xlu0 %444, %v335
        %v446 = vpop.permute.xlu0 %445
        %449 = vset.pattern.permute.xlu0 0
        %450 = vperm.xlu0 %449, %v336
        %v451 = vpop.permute.xlu0 %450
        %454 = vset.pattern.permute.xlu0 0
        %455 = vperm.xlu0 %454, %v337
        %v456 = vpop.permute.xlu0 %455
        %459 = vset.pattern.permute.xlu0 0
        %460 = vperm.xlu0 %459, %v338
        %v461 = vpop.permute.xlu0 %460
        %464 = vset.pattern.permute.xlu0 0
        %465 = vperm.xlu0 %464, %v339
        %v466 = vpop.permute.xlu0 %465
        %469 = vset.pattern.permute.xlu0 0
        %470 = vperm.xlu0 %469, %v340
        %v471 = vpop.permute.xlu0 %470
        %474 = vset.pattern.permute.xlu0 0
        %475 = vperm.xlu0 %474, %v341
        %v476 = vpop.permute.xlu0 %475
        %479 = vset.pattern.permute.xlu0 0
        %480 = vperm.xlu0 %479, %v342
        %v481 = vpop.permute.xlu0 %480
        %484 = vset.pattern.permute.xlu0 0
        %485 = vperm.xlu0 %484, %v343
        %v486 = vpop.permute.xlu0 %485
        %489 = vset.pattern.permute.xlu0 0
        %490 = vperm.xlu0 %489, %v344
        %v491 = vpop.permute.xlu0 %490
        %494 = vset.pattern.permute.xlu0 0
        %495 = vperm.xlu0 %494, %v345
        %v496 = vpop.permute.xlu0 %495
        %499 = vset.pattern.permute.xlu0 0
        %500 = vperm.xlu0 %499, %v346
        %v501 = vpop.permute.xlu0 %500
        %504 = vset.pattern.permute.xlu0 0
        %505 = vperm.xlu0 %504, %v347
        %v506 = vpop.permute.xlu0 %505
        %v540 = vunpack.c.l.b16 %v279
        %v541 = vunpack.c.l.b16 %v280
        %v542 = vunpack.c.l.b16 %v281
        %v543 = vunpack.c.l.b16 %v282
        %v544 = vunpack.c.l.b16 %v283
        %v545 = vunpack.c.l.b16 %v284
        %v546 = vunpack.c.l.b16 %v285
        %v547 = vunpack.c.l.b16 %v286
        %v548 = vunpack.c.l.b16 %v287
        %v549 = vunpack.c.l.b16 %v288
        %v550 = vunpack.c.l.b16 %v289
        %v551 = vunpack.c.l.b16 %v290
        %v552 = vunpack.c.l.b16 %v291
        %v553 = vunpack.c.l.b16 %v292
        %v554 = vunpack.c.l.b16 %v293
        %v555 = vunpack.c.l.b16 %v294
        %v556 = vunpack.c.l.b16 %v295
        %v557 = vunpack.c.l.b16 %v296
        %v558 = vunpack.c.l.b16 %v297
        %v559 = vunpack.c.l.b16 %v298
        %v560 = vunpack.c.l.b16 %v299
        %v561 = vunpack.c.l.b16 %v300
        %v562 = vunpack.c.l.b16 %v301
        %v563 = vunpack.c.l.b16 %v302
        %v564 = vunpack.c.l.b16 %v303
        %v565 = vunpack.c.l.b16 %v304
        %v566 = vunpack.c.l.b16 %v305
        %v567 = vunpack.c.l.b16 %v306
        %v568 = vunpack.c.l.b16 %v307
        %v569 = vunpack.c.l.b16 %v308
        %v570 = vunpack.c.l.b16 %v309
        %v571 = vunpack.c.l.b16 %v310
        %v572 = vpack.c.b16 %v541, %v540
        %v573 = vpack.c.b16 %v543, %v542
        %v574 = vpack.c.b16 %v545, %v544
        %v575 = vpack.c.b16 %v547, %v546
        %v576 = vpack.c.b16 %v549, %v548
        %v577 = vpack.c.b16 %v551, %v550
        %v578 = vpack.c.b16 %v553, %v552
        %v579 = vpack.c.b16 %v555, %v554
        %v580 = vpack.c.b16 %v557, %v556
        %v581 = vpack.c.b16 %v559, %v558
        %v582 = vpack.c.b16 %v561, %v560
        %v583 = vpack.c.b16 %v563, %v562
        %v584 = vpack.c.b16 %v565, %v564
        %v585 = vpack.c.b16 %v567, %v566
        %v586 = vpack.c.b16 %v569, %v568
        %v587 = vpack.c.b16 %v571, %v570
        %v593 = vunpack.c.l.b16 %v311
        %v594 = vunpack.c.h.b16 %v311
        %v595 = vunpack.c.l.b16 %v312
        %v596 = vunpack.c.h.b16 %v312
        %v597 = vunpack.c.l.b16 %v313
        %v598 = vunpack.c.h.b16 %v313
        %v599 = vunpack.c.l.b16 %v314
        %v600 = vunpack.c.h.b16 %v314
        %v601 = vunpack.c.l.b16 %v315
        %v602 = vunpack.c.h.b16 %v315
        %v603 = vpack.c.b16 %v595, %v593
        %v604 = vpack.c.b16 %v596, %v594
        %v605 = vpack.c.b16 %v599, %v597
        %v606 = vpack.c.b16 %v600, %v598
        %v607 = vpack.c.b16 %v601, %v601
        %v608 = vpack.c.b16 %v602, %v602
        %vm613 = vcmask 293888
        %v615 = vsel %vm613, %v572, 0
        %v618 = vsel %vm613, %v573, 0
        %v621 = vsel %vm613, %v574, 0
        %v624 = vsel %vm613, %v575, 0
        %v627 = vsel %vm613, %v576, 0
        %v630 = vsel %vm613, %v577, 0
        %v633 = vsel %vm613, %v578, 0
        %v636 = vsel %vm613, %v579, 0
        %v639 = vsel %vm613, %v580, 0
        %v642 = vsel %vm613, %v581, 0
        %v645 = vsel %vm613, %v582, 0
        %v648 = vsel %vm613, %v583, 0
        %v651 = vsel %vm613, %v584, 0
        %v654 = vsel %vm613, %v585, 0
        %v657 = vsel %vm613, %v586, 0
        %v660 = vsel %vm613, %v587, 0
        %vm662 = vcmask 1041408
        %v664 = vsel %vm662, %v607, 0
        %v667 = vsel %vm662, %v608, 0
        %669 = vmatprep.subr.bf16.mxu0 %v604
        %670 = vmatpush1.bf16.msra.mxu0 %v603
        %671 = vmatprep.subr.bf16.mxu0 %v606
        %672 = vmatpush1.bf16.msra.mxu0 %v605
        %673 = vmatprep.subr.bf16.mxu0 %v667
        %674 = vmatpush1.bf16.msra.mxu0 %v664
        %675 = vmatprep.subr.bf16.mxu0 0
        %676 = vmatpush1.bf16.msra.mxu0 0
        %677 = vmatprep.subr.bf16.mxu0 0
        %678 = vmatpush1.bf16.msra.mxu0 0
        %679 = vmatprep.subr.bf16.mxu0 0
        %680 = vmatpush1.bf16.msra.mxu0 0
        %681 = vmatprep.subr.bf16.mxu0 0
        %682 = vmatpush1.bf16.msra.mxu0 0
        %683 = vmatprep.subr.bf16.mxu0 0
        %684 = vmatpush1.bf16.msra.mxu0 0
        %685 = vmatprep.subr.bf16.mxu0 0
        %686 = vmatpush1.bf16.msra.mxu0 0
        %687 = vmatprep.subr.bf16.mxu0 0
        %688 = vmatpush1.bf16.msra.mxu0 0
        %689 = vmatprep.subr.bf16.mxu0 0
        %690 = vmatpush1.bf16.msra.mxu0 0
        %691 = vmatprep.subr.bf16.mxu0 0
        %692 = vmatpush1.bf16.msra.mxu0 0
        %693 = vmatprep.subr.bf16.mxu0 0
        %694 = vmatpush1.bf16.msra.mxu0 0
        %695 = vmatprep.subr.bf16.mxu0 0
        %696 = vmatpush1.bf16.msra.mxu0 0
        %697 = vmatprep.subr.bf16.mxu0 0
        %698 = vmatpush1.bf16.msra.mxu0 0
        %699 = vmatprep.subr.bf16.mxu0 0
        %700 = vmatpush1.bf16.msra.mxu0 0
        %701 = vmatprep.mubr.bf16.mxu0 0
        %702 = vmatmul.mubr.bf16.gmra.mrb[0].mxu0 %v615
        %v703 = vpop.f32.mrb[0].mxu0
        %v704 = vadd.f32 %v351, %v703
        %v705 = vpop.f32.mrb[0].mxu0
        %v706 = vadd.f32 %v351, %v705
        %v707 = vpop.f32.mrb[0].mxu0
        %v708 = vadd.f32 %v356, %v707
        %v709 = vpop.f32.mrb[0].mxu0
        %v710 = vadd.f32 %v356, %v709
        %711 = vmatprep.mubr.bf16.mxu0 0
        %712 = vmatmul.mubr.bf16.gmra.mrb[0].mxu0 %v618
        %v713 = vpop.f32.mrb[0].mxu0
        %v714 = vadd.f32 %v361, %v713
        %v715 = vpop.f32.mrb[0].mxu0
        %v716 = vadd.f32 %v361, %v715
        %v717 = vpop.f32.mrb[0].mxu0
        %v718 = vadd.f32 %v366, %v717
        %v719 = vpop.f32.mrb[0].mxu0
        %v720 = vadd.f32 %v366, %v719
        %721 = vmatprep.mubr.bf16.mxu0 0
        %722 = vmatmul.mubr.bf16.gmra.mrb[0].mxu0 %v621
        %v723 = vpop.f32.mrb[0].mxu0
        %v724 = vadd.f32 %v371, %v723
        %v725 = vpop.f32.mrb[0].mxu0
        %v726 = vadd.f32 %v371, %v725
        %v727 = vpop.f32.mrb[0].mxu0
        %v728 = vadd.f32 %v376, %v727
        %v729 = vpop.f32.mrb[0].mxu0
        %v730 = vadd.f32 %v376, %v729
        %731 = vmatprep.mubr.bf16.mxu0 0
        %732 = vmatmul.mubr.bf16.gmra.mrb[0].mxu0 %v624
        %v733 = vpop.f32.mrb[0].mxu0
        %v734 = vadd.f32 %v381, %v733
        %v735 = vpop.f32.mrb[0].mxu0
        %v736 = vadd.f32 %v381, %v735
        %v737 = vpop.f32.mrb[0].mxu0
        %v738 = vadd.f32 %v386, %v737
        %v739 = vpop.f32.mrb[0].mxu0
        %v740 = vadd.f32 %v386, %v739
        %741 = vmatprep.mubr.bf16.mxu0 0
        %742 = vmatmul.mubr.bf16.gmra.mrb[0].mxu0 %v627
        %v743 = vpop.f32.mrb[0].mxu0
        %v744 = vadd.f32 %v391, %v743
        %v745 = vpop.f32.mrb[0].mxu0
        %v746 = vadd.f32 %v391, %v745
        %v747 = vpop.f32.mrb[0].mxu0
        %v748 = vadd.f32 %v396, %v747
        %v749 = vpop.f32.mrb[0].mxu0
        %v750 = vadd.f32 %v396, %v749
        %751 = vmatprep.mubr.bf16.mxu0 0
        %752 = vmatmul.mubr.bf16.gmra.mrb[0].mxu0 %v630
        %v753 = vpop.f32.mrb[0].mxu0
        %v754 = vadd.f32 %v401, %v753
        %v755 = vpop.f32.mrb[0].mxu0
        %v756 = vadd.f32 %v401, %v755
        %v757 = vpop.f32.mrb[0].mxu0
        %v758 = vadd.f32 %v406, %v757
        %v759 = vpop.f32.mrb[0].mxu0
        %v760 = vadd.f32 %v406, %v759
        %761 = vmatprep.mubr.bf16.mxu0 0
        %762 = vmatmul.mubr.bf16.gmra.mrb[0].mxu0 %v633
        %v763 = vpop.f32.mrb[0].mxu0
        %v764 = vadd.f32 %v411, %v763
        %v765 = vpop.f32.mrb[0].mxu0
        %v766 = vadd.f32 %v411, %v765
        %v767 = vpop.f32.mrb[0].mxu0
        %v768 = vadd.f32 %v416, %v767
        %v769 = vpop.f32.mrb[0].mxu0
        %v770 = vadd.f32 %v416, %v769
        %771 = vmatprep.mubr.bf16.mxu0 0
        %772 = vmatmul.mubr.bf16.gmra.mrb[0].mxu0 %v636
        %v773 = vpop.f32.mrb[0].mxu0
        %v774 = vadd.f32 %v421, %v773
        %v775 = vpop.f32.mrb[0].mxu0
        %v776 = vadd.f32 %v421, %v775
        %v777 = vpop.f32.mrb[0].mxu0
        %v778 = vadd.f32 %v426, %v777
        %v779 = vpop.f32.mrb[0].mxu0
        %v780 = vadd.f32 %v426, %v779
        %781 = vmatprep.mubr.bf16.mxu0 0
        %782 = vmatmul.mubr.bf16.gmra.mrb[0].mxu0 %v639
        %v783 = vpop.f32.mrb[0].mxu0
        %v784 = vadd.f32 %v431, %v783
        %v785 = vpop.f32.mrb[0].mxu0
        %v786 = vadd.f32 %v431, %v785
        %v787 = vpop.f32.mrb[0].mxu0
        %v788 = vadd.f32 %v436, %v787
        %v789 = vpop.f32.mrb[0].mxu0
        %v790 = vadd.f32 %v436, %v789
        %791 = vmatprep.mubr.bf16.mxu0 0
        %792 = vmatmul.mubr.bf16.gmra.mrb[0].mxu0 %v642
        %v793 = vpop.f32.mrb[0].mxu0
        %v794 = vadd.f32 %v441, %v793
        %v795 = vpop.f32.mrb[0].mxu0
        %v796 = vadd.f32 %v441, %v795
        %v797 = vpop.f32.mrb[0].mxu0
        %v798 = vadd.f32 %v446, %v797
        %v799 = vpop.f32.mrb[0].mxu0
        %v800 = vadd.f32 %v446, %v799
        %801 = vmatprep.mubr.bf16.mxu0 0
        %802 = vmatmul.mubr.bf16.gmra.mrb[0].mxu0 %v645
        %v803 = vpop.f32.mrb[0].mxu0
        %v804 = vadd.f32 %v451, %v803
        %v805 = vpop.f32.mrb[0].mxu0
        %v806 = vadd.f32 %v451, %v805
        %v807 = vpop.f32.mrb[0].mxu0
        %v808 = vadd.f32 %v456, %v807
        %v809 = vpop.f32.mrb[0].mxu0
        %v810 = vadd.f32 %v456, %v809
        %811 = vmatprep.mubr.bf16.mxu0 0
        %812 = vmatmul.mubr.bf16.gmra.mrb[0].mxu0 %v648
        %v813 = vpop.f32.mrb[0].mxu0
        %v814 = vadd.f32 %v461, %v813
        %v815 = vpop.f32.mrb[0].mxu0
        %v816 = vadd.f32 %v461, %v815
        %v817 = vpop.f32.mrb[0].mxu0
        %v818 = vadd.f32 %v466, %v817
        %v819 = vpop.f32.mrb[0].mxu0
        %v820 = vadd.f32 %v466, %v819
        %821 = vmatprep.mubr.bf16.mxu0 0
        %822 = vmatmul.mubr.bf16.gmra.mrb[0].mxu0 %v651
        %v823 = vpop.f32.mrb[0].mxu0
        %v824 = vadd.f32 %v471, %v823
        %v825 = vpop.f32.mrb[0].mxu0
        %v826 = vadd.f32 %v471, %v825
        %v827 = vpop.f32.mrb[0].mxu0
        %v828 = vadd.f32 %v476, %v827
        %v829 = vpop.f32.mrb[0].mxu0
        %v830 = vadd.f32 %v476, %v829
        %831 = vmatprep.mubr.bf16.mxu0 0
        %832 = vmatmul.mubr.bf16.gmra.mrb[0].mxu0 %v654
        %v833 = vpop.f32.mrb[0].mxu0
        %v834 = vadd.f32 %v481, %v833
        %v835 = vpop.f32.mrb[0].mxu0
        %v836 = vadd.f32 %v481, %v835
        %v837 = vpop.f32.mrb[0].mxu0
        %v838 = vadd.f32 %v486, %v837
        %v839 = vpop.f32.mrb[0].mxu0
        %v840 = vadd.f32 %v486, %v839
        %841 = vmatprep.mubr.bf16.mxu0 0
        %842 = vmatmul.mubr.bf16.gmra.mrb[0].mxu0 %v657
        %v843 = vpop.f32.mrb[0].mxu0
        %v844 = vadd.f32 %v491, %v843
        %v845 = vpop.f32.mrb[0].mxu0
        %v846 = vadd.f32 %v491, %v845
        %v847 = vpop.f32.mrb[0].mxu0
        %v848 = vadd.f32 %v496, %v847
        %v849 = vpop.f32.mrb[0].mxu0
        %v850 = vadd.f32 %v496, %v849
        %851 = vmatprep.mubr.bf16.mxu0 0
        %852 = vmatmul.mubr.bf16.gmra.mrb[0].mxu0 %v660
        %v853 = vpop.f32.mrb[0].mxu0
        %v854 = vadd.f32 %v501, %v853
        %v855 = vpop.f32.mrb[0].mxu0
        %v856 = vadd.f32 %v501, %v855
        %v857 = vpop.f32.mrb[0].mxu0
        %v858 = vadd.f32 %v506, %v857
        %v859 = vpop.f32.mrb[0].mxu0
        %v860 = vadd.f32 %v506, %v859
        %861 = vdwg.mxu0
        %v862 = vmax.f32 %v704, 0.0
        %v863 = vmax.f32 %v706, 0.0
        %v864 = vmax.f32 %v708, 0.0
        %v865 = vmax.f32 %v710, 0.0
        %v866 = vmax.f32 %v714, 0.0
        %v867 = vmax.f32 %v716, 0.0
        %v868 = vmax.f32 %v718, 0.0
        %v869 = vmax.f32 %v720, 0.0
        %v870 = vmax.f32 %v724, 0.0
        %v871 = vmax.f32 %v726, 0.0
        %v872 = vmax.f32 %v728, 0.0
        %v873 = vmax.f32 %v730, 0.0
        %v874 = vmax.f32 %v734, 0.0
        %v875 = vmax.f32 %v736, 0.0
        %v876 = vmax.f32 %v738, 0.0
        %v877 = vmax.f32 %v740, 0.0
        %v878 = vmax.f32 %v744, 0.0
        %v879 = vmax.f32 %v746, 0.0
        %v880 = vmax.f32 %v748, 0.0
        %v881 = vmax.f32 %v750, 0.0
        %v882 = vmax.f32 %v754, 0.0
        %v883 = vmax.f32 %v756, 0.0
        %v884 = vmax.f32 %v758, 0.0
        %v885 = vmax.f32 %v760, 0.0
        %v886 = vmax.f32 %v764, 0.0
        %v887 = vmax.f32 %v766, 0.0
        %v888 = vmax.f32 %v768, 0.0
        %v889 = vmax.f32 %v770, 0.0
        %v890 = vmax.f32 %v774, 0.0
        %v891 = vmax.f32 %v776, 0.0
        %v892 = vmax.f32 %v778, 0.0
        %v893 = vmax.f32 %v780, 0.0
        %v894 = vmax.f32 %v784, 0.0
        %v895 = vmax.f32 %v786, 0.0
        %v896 = vmax.f32 %v788, 0.0
        %v897 = vmax.f32 %v790, 0.0
        %v898 = vmax.f32 %v794, 0.0
        %v899 = vmax.f32 %v796, 0.0
        %v900 = vmax.f32 %v798, 0.0
        %v901 = vmax.f32 %v800, 0.0
        %v902 = vmax.f32 %v804, 0.0
        %v903 = vmax.f32 %v806, 0.0
        %v904 = vmax.f32 %v808, 0.0
        %v905 = vmax.f32 %v810, 0.0
        %v906 = vmax.f32 %v814, 0.0
        %v907 = vmax.f32 %v816, 0.0
        %v908 = vmax.f32 %v818, 0.0
        %v909 = vmax.f32 %v820, 0.0
        %v910 = vmax.f32 %v824, 0.0
        %v911 = vmax.f32 %v826, 0.0
        %v912 = vmax.f32 %v828, 0.0
        %v913 = vmax.f32 %v830, 0.0
        %v914 = vmax.f32 %v834, 0.0
        %v915 = vmax.f32 %v836, 0.0
        %v916 = vmax.f32 %v838, 0.0
        %v917 = vmax.f32 %v840, 0.0
        %v918 = vmax.f32 %v844, 0.0
        %v919 = vmax.f32 %v846, 0.0
        %v920 = vmax.f32 %v848, 0.0
        %v921 = vmax.f32 %v850, 0.0
        %v922 = vmax.f32 %v854, 0.0
        %v923 = vmax.f32 %v856, 0.0
        %v924 = vmax.f32 %v858, 0.0
        %v925 = vmax.f32 %v860, 0.0
        %v926 = vpack.c.bf16 %v864, %v862
        %v927 = vpack.c.bf16 %v865, %v863
        %v928 = vpack.c.bf16 %v868, %v866
        %v929 = vpack.c.bf16 %v869, %v867
        %v930 = vpack.c.bf16 %v872, %v870
        %v931 = vpack.c.bf16 %v873, %v871
        %v932 = vpack.c.bf16 %v876, %v874
        %v933 = vpack.c.bf16 %v877, %v875
        %v934 = vpack.c.bf16 %v880, %v878
        %v935 = vpack.c.bf16 %v881, %v879
        %v936 = vpack.c.bf16 %v884, %v882
        %v937 = vpack.c.bf16 %v885, %v883
        %v938 = vpack.c.bf16 %v888, %v886
        %v939 = vpack.c.bf16 %v889, %v887
        %v940 = vpack.c.bf16 %v892, %v890
        %v941 = vpack.c.bf16 %v893, %v891
        %v942 = vpack.c.bf16 %v896, %v894
        %v943 = vpack.c.bf16 %v897, %v895
        %v944 = vpack.c.bf16 %v900, %v898
        %v945 = vpack.c.bf16 %v901, %v899
        %v946 = vpack.c.bf16 %v904, %v902
        %v947 = vpack.c.bf16 %v905, %v903
        %v948 = vpack.c.bf16 %v908, %v906
        %v949 = vpack.c.bf16 %v909, %v907
        %v950 = vpack.c.bf16 %v912, %v910
        %v951 = vpack.c.bf16 %v913, %v911
        %v952 = vpack.c.bf16 %v916, %v914
        %v953 = vpack.c.bf16 %v917, %v915
        %v954 = vpack.c.bf16 %v920, %v918
        %v955 = vpack.c.bf16 %v921, %v919
        %v956 = vpack.c.bf16 %v924, %v922
        %v957 = vpack.c.bf16 %v925, %v923
        %v958 = vld [vmem:[%s3] sm:$0xff]
        %v959 = vld [vmem:[%s4] sm:$0xff]
        %961 = vset.pattern.permute.xlu0 0
        %962 = vperm.xlu0 %961, %v959
        %v963 = vpop.permute.xlu0 %962
        %v966 = vunpack.c.l.b16 %v958
        %v967 = vunpack.c.h.b16 %v958
        %v968 = vpack.c.b16 %v966, %v966
        %v969 = vpack.c.b16 %v967, %v967
        %972 = vmatprep.subr.bf16.mxu0 %v927
        %973 = vmatpush1.bf16.msra.mxu0 %v926
        %974 = vmatprep.subr.bf16.mxu0 %v929
        %975 = vmatpush1.bf16.msra.mxu0 %v928
        %976 = vmatprep.subr.bf16.mxu0 %v931
        %977 = vmatpush1.bf16.msra.mxu0 %v930
        %978 = vmatprep.subr.bf16.mxu0 %v933
        %979 = vmatpush1.bf16.msra.mxu0 %v932
        %980 = vmatprep.subr.bf16.mxu0 %v935
        %981 = vmatpush1.bf16.msra.mxu0 %v934
        %982 = vmatprep.subr.bf16.mxu0 %v937
        %983 = vmatpush1.bf16.msra.mxu0 %v936
        %984 = vmatprep.subr.bf16.mxu0 %v939
        %985 = vmatpush1.bf16.msra.mxu0 %v938
        %986 = vmatprep.subr.bf16.mxu0 %v941
        %987 = vmatpush1.bf16.msra.mxu0 %v940
        %988 = vmatprep.subr.bf16.mxu0 %v943
        %989 = vmatpush1.bf16.msra.mxu0 %v942
        %990 = vmatprep.subr.bf16.mxu0 %v945
        %991 = vmatpush1.bf16.msra.mxu0 %v944
        %992 = vmatprep.subr.bf16.mxu0 %v947
        %993 = vmatpush1.bf16.msra.mxu0 %v946
        %994 = vmatprep.subr.bf16.mxu0 %v949
        %995 = vmatpush1.bf16.msra.mxu0 %v948
        %996 = vmatprep.subr.bf16.mxu0 %v951
        %997 = vmatpush1.bf16.msra.mxu0 %v950
        %998 = vmatprep.subr.bf16.mxu0 %v953
        %999 = vmatpush1.bf16.msra.mxu0 %v952
        %1000 = vmatprep.subr.bf16.mxu0 %v955
        %1001 = vmatpush1.bf16.msra.mxu0 %v954
        %1002 = vmatprep.subr.bf16.mxu0 %v957
        %1003 = vmatpush1.bf16.msra.mxu0 %v956
        %1004 = vmatprep.mubr.bf16.mxu0 %v969
        %1005 = vmatmul.mubr.bf16.gmra.mrb[0].mxu0 %v968
        %v1006 = vpop.f32.mrb[0].mxu0
        %v1007 = vadd.f32 %v963, %v1006
        %v1008 = vpop.f32.mrb[0].mxu0
        %v1009 = vadd.f32 %v963, %v1008
        %v1010 = vpop.f32.mrb[0].mxu0
        %v1011 = vpop.f32.mrb[0].mxu0
        %1012 = vdwg.mxu0
        %1013 = vst [vmem:[%s276] sm:$0xff] %v1007
        %1014 = vst [vmem:[%s276 + $0x8] sm:$0xff] %v1009
        %s1015 = smul.u32 2, %s16
        %p1016 = scmp.lt.s32.totalorder %s1015, 3
        %s1017 = scalar_select %p1016, %s1015, 3
        %s1018 = smul.addr %s1017, 8
        %s1019 = scalar_lea.vmem %s5, %s1018
        // Predicated region
        $region79: #{decoder_forward.1} parent=73 // pred_check
          %p1020 = pneg %p144
        $region80: #{decoder_forward.1} parent=73 // pred_check_branch
          %1022 = sbr.rel (%p1020) target = $region82
        $region81: #{decoder_forward.1} parent=73 // pred_region
          %s1023 = smul.u32 2, %s16
        $region82: #{decoder_forward.1} parent=73 // pred_fallthru
          _
      $region74: #{decoder_forward.1} parent=5 // pred_fallthru
        _
      %p1024 = scmp.le.s32.totalorder 2, %s11
      // Predicated region
      $region83: #{decoder_forward.1} parent=5 // pred_check
        %p1025 = pneg %p1024
      $region84: #{decoder_forward.1} parent=5 // pred_check_branch
        %1027 = sbr.rel (%p1025) target = $region86
      $region85: #{decoder_forward.1} parent=5 // pred_region
        %s1028 = ssub.s32 %s11, 2
        // Predicated region
        $region87: #{decoder_forward.1} parent=85 // pred_check
          %p1029 = pneg %p150
        $region88: #{decoder_forward.1} parent=85 // pred_check_branch
          %1031 = sbr.rel (%p1029) target = $region90
        $region89: #{decoder_forward.1} parent=85 // pred_region
          %s1032 = smul.u32 2, %s17
          %p1033 = scmp.lt.s32.totalorder %s1032, 3
          %s1034 = scalar_select %p1033, %s1032, 3
          %s1035 = smul.addr %s1034, 8
          %s1036 = scalar_lea.vmem %s5, %s1035
        $region90: #{decoder_forward.1} parent=85 // pred_fallthru
          _
      $region86: #{decoder_forward.1} parent=5 // pred_fallthru
        _
    $region6: #{decoder_forward.1} parent=1 // loop_footer
      %s15 = sadd.s32 1, %s11
    $region7: #{decoder_forward.1} parent=1 // loop_footer_branch
      %10 = sbr.rel target = $region3
    $region8: #{decoder_forward.1} parent=1 // loop_exit
      _

</llo_original>
